<compile_context>
chip_gen: v7x
topology: tpu7x:2x2x1
jax: 0.10.0
libtpu: 0.0.40
codegen_flags: <defaults>
</compile_context>

<pallas_src>
import functools

import jax
import jax.numpy as jnp
from jax.experimental import pallas as pl
from jax.experimental.pallas import tpu as pltpu


def _round_up(n, m):
    return ((n + m - 1) // m) * m


def _dueling_kernel(x_ref, w1_ref, b1_ref, w2_ref, b2_ref, wh_ref, bh_ref,
                    out_ref, acc_ref, *, batch, block_rows, action_size,
                    inv_count):
    """One batch tile of the dueling-DQN forward.

    x_ref   : [TB, S]      streamed per grid step
    w*/b*   : resident weights (linear1, linear2, fused heads)
    out_ref : [B_pad, A]   resident across the whole grid (written per-tile,
                           mean-corrected at the last step)
    acc_ref : (1, 1) f32   running sum of (valid) advantage entries
    """
    i = pl.program_id(0)

    @pl.when(i == 0)
    def _():
        acc_ref[...] = jnp.zeros_like(acc_ref)

    x = x_ref[...]                                                 # [TB, S]

    # linear1 + ReLU
    h1 = jnp.dot(x, w1_ref[...], preferred_element_type=jnp.float32)
    h1 = jnp.maximum(h1 + b1_ref[...], 0.0)                        # [TB, H1]

    # linear2 + ReLU
    h2 = jnp.dot(h1, w2_ref[...], preferred_element_type=jnp.float32)
    h2 = jnp.maximum(h2 + b2_ref[...], 0.0)                        # [TB, H2]

    # fused heads: columns 0..A-1 = advantage, column A = value
    y = jnp.dot(h2, wh_ref[...], preferred_element_type=jnp.float32) + bh_ref[...]
    adv = y[:, :action_size]                                       # [TB, A]
    val = y[:, action_size:action_size + 1]                        # [TB, 1]

    # Write this tile's un-centered result into the resident output block.
    row_start = pl.multiple_of(i * block_rows, block_rows)
    out_ref[pl.ds(row_start, block_rows), :] = val + adv

    # Accumulate the global advantage sum, excluding padded rows.
    row_ids = row_start + jax.lax.broadcasted_iota(jnp.int32, adv.shape, 0)
    adv_valid = jnp.where(row_ids < batch, adv, 0.0)
    acc_ref[...] += jnp.sum(adv_valid, keepdims=True)              # (1, 1)

    # Last step: subtract the global mean from the whole resident output.
    @pl.when(i == pl.num_programs(0) - 1)
    def _():
        adv_mean = acc_ref[...] * inv_count                        # (1, 1)
        out_ref[...] = out_ref[...] - adv_mean


def dueling_dqn_forward(x, params, *, block_rows=512):
    """Pallas dueling-DQN forward.  Weights stored as [in, out] -> x @ W + b."""
    (w1, b1, w2, b2, wa, ba, wv, bv) = params
    batch, state_size = x.shape
    action_size = wa.shape[1]

    # Fuse advantage + value heads into one matmul (and one bias add).
    wh = jnp.concatenate([wa, wv], axis=1)       # [H2, A+1]
    bh = jnp.concatenate([ba, bv], axis=1)       # [1, A+1]

    # Row tile: multiple of 8 sublanes, capped by block_rows.
    tb = _round_up(min(block_rows, batch), 8)
    batch_pad = _round_up(batch, tb)
    if batch_pad != batch:
        x = jnp.pad(x, ((0, batch_pad - batch), (0, 0)))
    n_tiles = batch_pad // tb

    kernel = functools.partial(
        _dueling_kernel,
        batch=batch,
        block_rows=tb,
        action_size=action_size,
        inv_count=1.0 / float(batch * action_size),
    )

    resident = lambda i: (0, 0)   # weights / output stay put across the grid
    grid_spec = pltpu.PrefetchScalarGridSpec(
        num_scalar_prefetch=0,
        grid=(n_tiles,),
        in_specs=[
            pl.BlockSpec((tb, state_size), lambda i: (i, 0)),   # x streamed
            pl.BlockSpec(w1.shape, resident),
            pl.BlockSpec(b1.shape, resident),
            pl.BlockSpec(w2.shape, resident),
            pl.BlockSpec(b2.shape, resident),
            pl.BlockSpec(wh.shape, resident),
            pl.BlockSpec(bh.shape, resident),
        ],
        out_specs=pl.BlockSpec((batch_pad, action_size), resident),
        scratch_shapes=[pltpu.VMEM((1, 1), jnp.float32)],
    )

    out = pl.pallas_call(
        kernel,
        grid_spec=grid_spec,
        out_shape=jax.ShapeDtypeStruct((batch_pad, action_size), jnp.float32),
        compiler_params=pltpu.CompilerParams(
            # The GLOBAL advantage mean couples batch tiles, so this axis must
            # stay sequential ("arbitrary"); a two-pass scheme would be needed
            # to legally mark it "parallel" for v7x's two TensorCores.
            dimension_semantics=("arbitrary",),
        ),
    )(x, w1, b1, w2, b2, wh, bh)

    return out[:batch]


def init_linear(key, fan_in, fan_out):
    """Mimic torch.nn.Linear default init (uniform +-1/sqrt(fan_in)).

    W returned as [fan_in, fan_out] (already transposed for x @ W); b as
    [1, fan_out] for clean 2D TPU layout.
    """
    kw, kb = jax.random.split(key)
    bound = 1.0 / jnp.sqrt(jnp.float32(fan_in))
    w = jax.random.uniform(kw, (fan_in, fan_out), jnp.float32, -bound, bound)
    b = jax.random.uniform(kb, (1, fan_out), jnp.float32, -bound, bound)
    return w, b


def reference_forward(x, params):
    """Plain-JAX reference mirroring the PyTorch module."""
    (w1, b1, w2, b2, wa, ba, wv, bv) = params
    hp = jax.lax.Precision.HIGHEST
    h1 = jnp.maximum(jnp.dot(x, w1, precision=hp) + b1, 0.0)
    h2 = jnp.maximum(jnp.dot(h1, w2, precision=hp) + b2, 0.0)
    adv = jnp.dot(h2, wa, precision=hp) + ba
    val = jnp.dot(h2, wv, precision=hp) + bv
    # Faithful to the PyTorch module: GLOBAL mean over batch AND actions.
    return val + adv - jnp.mean(adv)


if __name__ == "__main__":
    # Small shapes consistent with the module (Banana-nav style DQN).
    batch = 20            # deliberately NOT a multiple of the row tile
    state_size = 16
    hidden_size1 = 64
    hidden_size2 = 64
    action_size = 4

    key = jax.random.PRNGKey(0)
    k_x, k1, k2, k3, k4 = jax.random.split(key, 5)

    x = jax.random.normal(k_x, (batch, state_size), jnp.float32)

    w1, b1 = init_linear(k1, state_size, hidden_size1)
    w2, b2 = init_linear(k2, hidden_size1, hidden_size2)
    wa, ba = init_linear(k3, hidden_size2, action_size)
    wv, bv = init_linear(k4, hidden_size2, 1)
    params = (w1, b1, w2, b2, wa, ba, wv, bv)

    # block_rows=8 -> 3 grid steps at batch=20 (exercises tiling + row masking).
    out = dueling_dqn_forward(x, params, block_rows=8)
    jax.block_until_ready(out)

    ref = reference_forward(x, params)
    assert out.shape == (batch, action_size)
    assert jnp.allclose(out, ref, atol=1e-4, rtol=1e-4), "mismatch vs JAX reference"

    print("KERNEL_OK")
</pallas_src>

<mosaic_0001>
module attributes {stable_mosaic.version = 11 : i64} {
  func.func @_dueling_kernel(%arg0: i32, %arg1: memref<8x16xf32, #tpu.memory_space<vmem>>, %arg2: memref<16x64xf32, #tpu.memory_space<vmem>>, %arg3: memref<1x64xf32, #tpu.memory_space<vmem>>, %arg4: memref<64x64xf32, #tpu.memory_space<vmem>>, %arg5: memref<1x64xf32, #tpu.memory_space<vmem>>, %arg6: memref<64x5xf32, #tpu.memory_space<vmem>>, %arg7: memref<1x5xf32, #tpu.memory_space<vmem>>, %arg8: memref<24x4xf32, #tpu.memory_space<vmem>>, %arg9: memref<1x1xf32, #tpu.memory_space<vmem>>) attributes {dimension_semantics = [#tpu.dimension_semantics<arbitrary>], iteration_bounds = array<i64: 3>, scalar_prefetch = 0 : i64, scratch_operands = 1 : i64, tpu.core_type = #tpu.core_type<tc>, window_params = [{transform_indices = @transform_0, window_bounds = array<i64: 8, 16>}, {pipeline_mode = #tpu.pipeline_mode<synchronous>, transform_indices = @transform_1, window_bounds = array<i64: 16, 64>}, {pipeline_mode = #tpu.pipeline_mode<synchronous>, transform_indices = @transform_2, window_bounds = array<i64: 1, 64>}, {pipeline_mode = #tpu.pipeline_mode<synchronous>, transform_indices = @transform_3, window_bounds = array<i64: 64, 64>}, {pipeline_mode = #tpu.pipeline_mode<synchronous>, transform_indices = @transform_4, window_bounds = array<i64: 1, 64>}, {pipeline_mode = #tpu.pipeline_mode<synchronous>, transform_indices = @transform_5, window_bounds = array<i64: 64, 5>}, {pipeline_mode = #tpu.pipeline_mode<synchronous>, transform_indices = @transform_6, window_bounds = array<i64: 1, 5>}, {pipeline_mode = #tpu.pipeline_mode<synchronous>, transform_indices = @transform_7, window_bounds = array<i64: 24, 4>}]} {
    %c0_i32 = arith.constant 0 : i32
    %0 = arith.cmpi eq, %arg0, %c0_i32 : i32
    %1 = arith.extui %0 : i1 to i32
    %c0_i32_0 = arith.constant 0 : i32
    %2 = arith.cmpi ne, %1, %c0_i32_0 : i32
    scf.if %2 {
      %cst_26 = arith.constant 0.000000e+00 : f32
      %49 = vector.broadcast %cst_26 : f32 to vector<1x1xf32>
      %c0_27 = arith.constant 0 : index
      %c0_28 = arith.constant 0 : index
      %50 = vector.load %arg9[%c0_27, %c0_28] : memref<1x1xf32, #tpu.memory_space<vmem>>, vector<1x1xf32>
      tpu.vector_store %arg9[%c0_27, %c0_28], %49 {strides = array<i32>} : memref<1x1xf32, #tpu.memory_space<vmem>>, vector<1x1xf32>,
    } else {
    }
    %c0 = arith.constant 0 : index
    %c0_1 = arith.constant 0 : index
    %3 = vector.load %arg1[%c0, %c0_1] : memref<8x16xf32, #tpu.memory_space<vmem>>, vector<8x16xf32>
    %c0_2 = arith.constant 0 : index
    %c0_3 = arith.constant 0 : index
    %4 = vector.load %arg2[%c0_2, %c0_3] : memref<16x64xf32, #tpu.memory_space<vmem>>, vector<16x64xf32>
    %cst = arith.constant dense<0.000000e+00> : vector<8x64xf32>
    %5 = tpu.matmul %3, %4, %cst {dimension_numbers = #tpu.dot_dimension_numbers<[1], [0], [0], [1], [0, 0, 1, 1], [], []>} : vector<8x16xf32>, vector<16x64xf32>, vector<8x64xf32> -> vector<8x64xf32>
    %c0_4 = arith.constant 0 : index
    %c0_5 = arith.constant 0 : index
    %6 = vector.load %arg3[%c0_4, %c0_5] : memref<1x64xf32, #tpu.memory_space<vmem>>, vector<1x64xf32>
    %7 = vector.broadcast %6 : vector<1x64xf32> to vector<8x64xf32>
    %8 = arith.addf %5, %7 : vector<8x64xf32>
    %cst_6 = arith.constant 0.000000e+00 : f32
    %9 = vector.broadcast %cst_6 : f32 to vector<8x64xf32>
    %10 = arith.maximumf %8, %9 : vector<8x64xf32>
    %c0_7 = arith.constant 0 : index
    %c0_8 = arith.constant 0 : index
    %11 = vector.load %arg4[%c0_7, %c0_8] : memref<64x64xf32, #tpu.memory_space<vmem>>, vector<64x64xf32>
    %cst_9 = arith.constant dense<0.000000e+00> : vector<8x64xf32>
    %12 = tpu.matmul %10, %11, %cst_9 {dimension_numbers = #tpu.dot_dimension_numbers<[1], [0], [0], [1], [0, 0, 1, 1], [], []>} : vector<8x64xf32>, vector<64x64xf32>, vector<8x64xf32> -> vector<8x64xf32>
    %c0_10 = arith.constant 0 : index
    %c0_11 = arith.constant 0 : index
    %13 = vector.load %arg5[%c0_10, %c0_11] : memref<1x64xf32, #tpu.memory_space<vmem>>, vector<1x64xf32>
    %14 = vector.broadcast %13 : vector<1x64xf32> to vector<8x64xf32>
    %15 = arith.addf %12, %14 : vector<8x64xf32>
    %cst_12 = arith.constant 0.000000e+00 : f32
    %16 = vector.broadcast %cst_12 : f32 to vector<8x64xf32>
    %17 = arith.maximumf %15, %16 : vector<8x64xf32>
    %c0_13 = arith.constant 0 : index
    %c0_14 = arith.constant 0 : index
    %18 = vector.load %arg6[%c0_13, %c0_14] : memref<64x5xf32, #tpu.memory_space<vmem>>, vector<64x5xf32>
    %cst_15 = arith.constant dense<0.000000e+00> : vector<8x5xf32>
    %19 = tpu.matmul %17, %18, %cst_15 {dimension_numbers = #tpu.dot_dimension_numbers<[1], [0], [0], [1], [0, 0, 1, 1], [], []>} : vector<8x64xf32>, vector<64x5xf32>, vector<8x5xf32> -> vector<8x5xf32>
    %c0_16 = arith.constant 0 : index
    %c0_17 = arith.constant 0 : index
    %20 = vector.load %arg7[%c0_16, %c0_17] : memref<1x5xf32, #tpu.memory_space<vmem>>, vector<1x5xf32>
    %21 = vector.broadcast %20 : vector<1x5xf32> to vector<8x5xf32>
    %22 = arith.addf %19, %21 : vector<8x5xf32>
    %23 = vector.extract_strided_slice %22 {offsets = [0, 0], sizes = [8, 4], strides = [1, 1]} : vector<8x5xf32> to vector<8x4xf32>
    %24 = vector.extract_strided_slice %22 {offsets = [0, 4], sizes = [8, 1], strides = [1, 1]} : vector<8x5xf32> to vector<8x1xf32>
    %c8_i32 = arith.constant 8 : i32
    %25 = arith.muli %arg0, %c8_i32 : i32
    %26 = tpu.assume_multiple %25, 8 : i32
    %27 = vector.broadcast %24 : vector<8x1xf32> to vector<8x4xf32>
    %28 = arith.addf %27, %23 : vector<8x4xf32>
    %29 = arith.index_cast %26 : i32 to index
    %c0_18 = arith.constant 0 : index
    %30 = vector.load %arg8[%29, %c0_18] : memref<24x4xf32, #tpu.memory_space<vmem>>, vector<8x4xf32>
    tpu.vector_store %arg8[%29, %c0_18], %28 {strides = array<i32>} : memref<24x4xf32, #tpu.memory_space<vmem>>, vector<8x4xf32>,
    %31 = tpu.iota {dimensions = array<i32: 0>} : vector<8x4xi32>
    %32 = vector.broadcast %26 : i32 to vector<8x4xi32>
    %33 = arith.addi %32, %31 : vector<8x4xi32>
    %c20_i32 = arith.constant 20 : i32
    %34 = vector.broadcast %c20_i32 : i32 to vector<8x4xi32>
    %35 = arith.cmpi slt, %33, %34 : vector<8x4xi32>
    %cst_19 = arith.constant 0.000000e+00 : f32
    %36 = vector.broadcast %cst_19 : f32 to vector<8x4xf32>
    %37 = arith.select %35, %23, %36 : vector<8x4xi1>, vector<8x4xf32>
    %c0_20 = arith.constant 0 : index
    %c0_21 = arith.constant 0 : index
    %38 = vector.load %arg9[%c0_20, %c0_21] : memref<1x1xf32, #tpu.memory_space<vmem>>, vector<1x1xf32>
    %39 = vector.shape_cast %37 : vector<8x4xf32> to vector<1x8x4xf32>
    %cst_22 = arith.constant dense<0.000000e+00> : vector<1xf32>
    %40 = vector.multi_reduction <add>, %39, %cst_22 [1, 2] : vector<1x8x4xf32> to vector<1xf32>
    %41 = vector.shape_cast %40 : vector<1xf32> to vector<1x1x1xf32>
    %42 = vector.extract %41[0, 0, 0] : f32 from vector<1x1x1xf32>
    %43 = vector.broadcast %42 : f32 to vector<1x1xf32>
    %44 = arith.addf %38, %43 : vector<1x1xf32>
    %c0_23 = arith.constant 0 : index
    %c0_24 = arith.constant 0 : index
    %45 = vector.load %arg9[%c0_23, %c0_24] : memref<1x1xf32, #tpu.memory_space<vmem>>, vector<1x1xf32>
    tpu.vector_store %arg9[%c0_23, %c0_24], %44 {strides = array<i32>} : memref<1x1xf32, #tpu.memory_space<vmem>>, vector<1x1xf32>,
    %c2_i32 = arith.constant 2 : i32
    %46 = arith.cmpi eq, %arg0, %c2_i32 : i32
    %47 = arith.extui %46 : i1 to i32
    %c0_i32_25 = arith.constant 0 : i32
    %48 = arith.cmpi ne, %47, %c0_i32_25 : i32
    scf.if %48 {
      %c0_26 = arith.constant 0 : index
      %c0_27 = arith.constant 0 : index
      %49 = vector.load %arg9[%c0_26, %c0_27] : memref<1x1xf32, #tpu.memory_space<vmem>>, vector<1x1xf32>
      %cst_28 = arith.constant 1.250000e-02 : f32
      %50 = vector.broadcast %cst_28 : f32 to vector<1x1xf32>
      %51 = arith.mulf %49, %50 : vector<1x1xf32>
      %c0_29 = arith.constant 0 : index
      %c0_30 = arith.constant 0 : index
      %52 = vector.load %arg8[%c0_29, %c0_30] : memref<24x4xf32, #tpu.memory_space<vmem>>, vector<24x4xf32>
      %53 = vector.broadcast %51 : vector<1x1xf32> to vector<24x4xf32>
      %54 = arith.subf %52, %53 : vector<24x4xf32>
      %c0_31 = arith.constant 0 : index
      %c0_32 = arith.constant 0 : index
      %55 = vector.load %arg8[%c0_31, %c0_32] : memref<24x4xf32, #tpu.memory_space<vmem>>, vector<24x4xf32>
      tpu.vector_store %arg8[%c0_31, %c0_32], %54 {strides = array<i32>} : memref<24x4xf32, #tpu.memory_space<vmem>>, vector<24x4xf32>,
    } else {
    }
    return
  }
  func.func @transform_0(%arg0: i32) -> (i32, i32) {
    %c0_i32 = arith.constant 0 : i32
    %c0_i32_0 = arith.constant 0 : i32
    return %arg0, %c0_i32 : i32, i32
  }
  func.func @transform_1(%arg0: i32) -> (i32, i32) {
    %c0_i32 = arith.constant 0 : i32
    %c0_i32_0 = arith.constant 0 : i32
    %c0_i32_1 = arith.constant 0 : i32
    return %c0_i32, %c0_i32_0 : i32, i32
  }
  func.func @transform_2(%arg0: i32) -> (i32, i32) {
    %c0_i32 = arith.constant 0 : i32
    %c0_i32_0 = arith.constant 0 : i32
    %c0_i32_1 = arith.constant 0 : i32
    return %c0_i32, %c0_i32_0 : i32, i32
  }
  func.func @transform_3(%arg0: i32) -> (i32, i32) {
    %c0_i32 = arith.constant 0 : i32
    %c0_i32_0 = arith.constant 0 : i32
    %c0_i32_1 = arith.constant 0 : i32
    return %c0_i32, %c0_i32_0 : i32, i32
  }
  func.func @transform_4(%arg0: i32) -> (i32, i32) {
    %c0_i32 = arith.constant 0 : i32
    %c0_i32_0 = arith.constant 0 : i32
    %c0_i32_1 = arith.constant 0 : i32
    return %c0_i32, %c0_i32_0 : i32, i32
  }
  func.func @transform_5(%arg0: i32) -> (i32, i32) {
    %c0_i32 = arith.constant 0 : i32
    %c0_i32_0 = arith.constant 0 : i32
    %c0_i32_1 = arith.constant 0 : i32
    return %c0_i32, %c0_i32_0 : i32, i32
  }
  func.func @transform_6(%arg0: i32) -> (i32, i32) {
    %c0_i32 = arith.constant 0 : i32
    %c0_i32_0 = arith.constant 0 : i32
    %c0_i32_1 = arith.constant 0 : i32
    return %c0_i32, %c0_i32_0 : i32, i32
  }
  func.func @transform_7(%arg0: i32) -> (i32, i32) {
    %c0_i32 = arith.constant 0 : i32
    %c0_i32_0 = arith.constant 0 : i32
    %c0_i32_1 = arith.constant 0 : i32
    return %c0_i32, %c0_i32_0 : i32, i32
  }
}

</mosaic_0001>

<llo_original>
// kernel: tpu_custom_call.1
$region0: #{tpu_custom_call.1}
  #allocation0 [shape = 'u32[]', space=smem, size = 0x4, offset = 0x4, fixed_abs, tag = 'smem constant byte address 0x4 - core index']
  #allocation1 [shape = 'u32[144,128]{1,0:T(1,128)}', space=vmem, size = 0x12000, scoped, tag = 'internal scratch']
  #allocation2 [shape = 'f32[1,1]{1,0:T(1,128)}', space=vmem, size = 0x200, scoped, tag = 'scratch operand']
  %s0 = inlined_call_operand.vmem [shape: f32[24,16], index: 0, kind: input, shape index: {}]
  %s1 = inlined_call_operand.vmem [shape: f32[16,64], index: 1, kind: input, shape index: {}]
  %s2 = inlined_call_operand.vmem [shape: f32[1,64], index: 2, kind: input, shape index: {}]
  %s3 = inlined_call_operand.vmem [shape: f32[64,64], index: 3, kind: input, shape index: {}]
  %s4 = inlined_call_operand.vmem [shape: f32[1,64], index: 4, kind: input, shape index: {}]
  %s5 = inlined_call_operand.vmem [shape: f32[64,5], index: 5, kind: input, shape index: {}]
  %s6 = inlined_call_operand.vmem [shape: f32[1,5], index: 6, kind: input, shape index: {}]
  %s7 = inlined_call_operand.vmem [shape: f32[24,4], index: 7, kind: output, shape index: {}]
  %s8 = sld [smem:[#allocation0]]
  $region69: #{tpu_custom_call.1} parent=0
    _
  %s10 = ssub.s32 1, %s8
  %s11 = scalar_select 0, %s10, %s8
  loop: start=0, step=1, limit=5
  $region2: #{tpu_custom_call.1} parent=0 // loop_pre_header
    _
  $region3: #{tpu_custom_call.1} parent=0 // loop_header
    %s13 = sphi 0, %s17
    %p14 = scmp.ge.s32.totalorder %s13, 5
    %s23 = sphi 0, %s25
    %s26 = sphi 0, %s23
    %s27 = sphi 0, %s26
    %s43 = sphi 0, %s27
    %s47 = sphi 0, %s47
    %s49 = sphi 0, %s47
    %s50 = sphi 0, %s49
    %s64 = sphi 0, %s50
    %s68 = sphi 0, %s68
    %s70 = sphi 0, %s68
    %s71 = sphi 0, %s70
    %s85 = sphi 0, %s71
    %s89 = sphi 0, %s89
    %s91 = sphi 0, %s89
    %s92 = sphi 0, %s91
    %s106 = sphi 0, %s92
    %s110 = sphi 0, %s110
    %s112 = sphi 0, %s110
    %s113 = sphi 0, %s112
    %s127 = sphi 0, %s113
    %s131 = sphi 0, %s131
    %s133 = sphi 0, %s131
    %s134 = sphi 0, %s133
    %s148 = sphi 0, %s134
    %s152 = sphi 0, %s152
    %s154 = sphi 0, %s152
    %s155 = sphi 0, %s154
    %s169 = sphi 0, %s155
    %s173 = sphi 0, %s173
    %s175 = sphi 0, %s173
    %s176 = sphi 0, %s175
    %s190 = sphi 0, %s176
  $region4: #{tpu_custom_call.1} parent=0 // loop_header_branch
    %16 = sbr.rel (%p14) target = $region8
  $region5: #{tpu_custom_call.1} parent=0 // loop_body
    %s18 = ssub.s32 %s13, 1
    %s19 = ssub.s32 %s13, 2
    %s20 = sadd.s32 %s13, 1
    %s21 = ssub.s32 %s13, %s20
    %p22 = scmp.eq.s32.totalorder %s21, 0
    %s24 = sadd.s32 %s23, 1
    %s25 = scalar_select %p22, %s23, %s24
    %p28 = pneg %p22
    %p29 = scmp.eq.s32.totalorder %s13, 2
    %p30 = por %p28, %p29
    %p31 = scmp.ne.s32.totalorder %s23, %s26
    %p32 = scmp.eq.s32.totalorder %s13, 0
    %p33 = por %p31, %p32
    %p34 = scmp.ne.s32.totalorder %s23, %s26
    %p35 = scmp.eq.s32.totalorder %s18, 2
    %p36 = por %p34, %p35
    %p37 = scmp.ne.s32.totalorder %s26, %s27
    %p38 = scmp.eq.s32.totalorder %s18, 0
    %p39 = por %p37, %p38
    %p40 = scmp.ne.s32.totalorder %s26, %s27
    %p41 = scmp.eq.s32.totalorder %s19, 2
    %p42 = por %p40, %p41
    %p44 = scmp.ne.s32.totalorder %s27, %s43
    %p45 = scmp.eq.s32.totalorder %s19, 0
    %p46 = por %p44, %p45
    %s48 = sadd.s32 %s47, 1
    %p51 = scmp.eq.s32.totalorder %s13, 2
    %p52 = scmp.ne.s32.totalorder %s47, %s49
    %p53 = scmp.eq.s32.totalorder %s13, 0
    %p54 = por %p52, %p53
    %p55 = scmp.ne.s32.totalorder %s47, %s49
    %p56 = scmp.eq.s32.totalorder %s18, 2
    %p57 = por %p55, %p56
    %p58 = scmp.ne.s32.totalorder %s49, %s50
    %p59 = scmp.eq.s32.totalorder %s18, 0
    %p60 = por %p58, %p59
    %p61 = scmp.ne.s32.totalorder %s49, %s50
    %p62 = scmp.eq.s32.totalorder %s19, 2
    %p63 = por %p61, %p62
    %p65 = scmp.ne.s32.totalorder %s50, %s64
    %p66 = scmp.eq.s32.totalorder %s19, 0
    %p67 = por %p65, %p66
    %s69 = sadd.s32 %s68, 1
    %p72 = scmp.eq.s32.totalorder %s13, 2
    %p73 = scmp.ne.s32.totalorder %s68, %s70
    %p74 = scmp.eq.s32.totalorder %s13, 0
    %p75 = por %p73, %p74
    %p76 = scmp.ne.s32.totalorder %s68, %s70
    %p77 = scmp.eq.s32.totalorder %s18, 2
    %p78 = por %p76, %p77
    %p79 = scmp.ne.s32.totalorder %s70, %s71
    %p80 = scmp.eq.s32.totalorder %s18, 0
    %p81 = por %p79, %p80
    %p82 = scmp.ne.s32.totalorder %s70, %s71
    %p83 = scmp.eq.s32.totalorder %s19, 2
    %p84 = por %p82, %p83
    %p86 = scmp.ne.s32.totalorder %s71, %s85
    %p87 = scmp.eq.s32.totalorder %s19, 0
    %p88 = por %p86, %p87
    %s90 = sadd.s32 %s89, 1
    %p93 = scmp.eq.s32.totalorder %s13, 2
    %p94 = scmp.ne.s32.totalorder %s89, %s91
    %p95 = scmp.eq.s32.totalorder %s13, 0
    %p96 = por %p94, %p95
    %p97 = scmp.ne.s32.totalorder %s89, %s91
    %p98 = scmp.eq.s32.totalorder %s18, 2
    %p99 = por %p97, %p98
    %p100 = scmp.ne.s32.totalorder %s91, %s92
    %p101 = scmp.eq.s32.totalorder %s18, 0
    %p102 = por %p100, %p101
    %p103 = scmp.ne.s32.totalorder %s91, %s92
    %p104 = scmp.eq.s32.totalorder %s19, 2
    %p105 = por %p103, %p104
    %p107 = scmp.ne.s32.totalorder %s92, %s106
    %p108 = scmp.eq.s32.totalorder %s19, 0
    %p109 = por %p107, %p108
    %s111 = sadd.s32 %s110, 1
    %p114 = scmp.eq.s32.totalorder %s13, 2
    %p115 = scmp.ne.s32.totalorder %s110, %s112
    %p116 = scmp.eq.s32.totalorder %s13, 0
    %p117 = por %p115, %p116
    %p118 = scmp.ne.s32.totalorder %s110, %s112
    %p119 = scmp.eq.s32.totalorder %s18, 2
    %p120 = por %p118, %p119
    %p121 = scmp.ne.s32.totalorder %s112, %s113
    %p122 = scmp.eq.s32.totalorder %s18, 0
    %p123 = por %p121, %p122
    %p124 = scmp.ne.s32.totalorder %s112, %s113
    %p125 = scmp.eq.s32.totalorder %s19, 2
    %p126 = por %p124, %p125
    %p128 = scmp.ne.s32.totalorder %s113, %s127
    %p129 = scmp.eq.s32.totalorder %s19, 0
    %p130 = por %p128, %p129
    %s132 = sadd.s32 %s131, 1
    %p135 = scmp.eq.s32.totalorder %s13, 2
    %p136 = scmp.ne.s32.totalorder %s131, %s133
    %p137 = scmp.eq.s32.totalorder %s13, 0
    %p138 = por %p136, %p137
    %p139 = scmp.ne.s32.totalorder %s131, %s133
    %p140 = scmp.eq.s32.totalorder %s18, 2
    %p141 = por %p139, %p140
    %p142 = scmp.ne.s32.totalorder %s133, %s134
    %p143 = scmp.eq.s32.totalorder %s18, 0
    %p144 = por %p142, %p143
    %p145 = scmp.ne.s32.totalorder %s133, %s134
    %p146 = scmp.eq.s32.totalorder %s19, 2
    %p147 = por %p145, %p146
    %p149 = scmp.ne.s32.totalorder %s134, %s148
    %p150 = scmp.eq.s32.totalorder %s19, 0
    %p151 = por %p149, %p150
    %s153 = sadd.s32 %s152, 1
    %p156 = scmp.eq.s32.totalorder %s13, 2
    %p157 = scmp.ne.s32.totalorder %s152, %s154
    %p158 = scmp.eq.s32.totalorder %s13, 0
    %p159 = por %p157, %p158
    %p160 = scmp.ne.s32.totalorder %s152, %s154
    %p161 = scmp.eq.s32.totalorder %s18, 2
    %p162 = por %p160, %p161
    %p163 = scmp.ne.s32.totalorder %s154, %s155
    %p164 = scmp.eq.s32.totalorder %s18, 0
    %p165 = por %p163, %p164
    %p166 = scmp.ne.s32.totalorder %s154, %s155
    %p167 = scmp.eq.s32.totalorder %s19, 2
    %p168 = por %p166, %p167
    %p170 = scmp.ne.s32.totalorder %s155, %s169
    %p171 = scmp.eq.s32.totalorder %s19, 0
    %p172 = por %p170, %p171
    %s174 = sadd.s32 %s173, 1
    %p177 = scmp.eq.s32.totalorder %s13, 2
    %p178 = scmp.ne.s32.totalorder %s173, %s175
    %p179 = scmp.eq.s32.totalorder %s13, 0
    %p180 = por %p178, %p179
    %p181 = scmp.ne.s32.totalorder %s173, %s175
    %p182 = scmp.eq.s32.totalorder %s18, 2
    %p183 = por %p181, %p182
    %p184 = scmp.ne.s32.totalorder %s175, %s176
    %p185 = scmp.eq.s32.totalorder %s18, 0
    %p186 = por %p184, %p185
    %p187 = scmp.ne.s32.totalorder %s175, %s176
    %p188 = scmp.eq.s32.totalorder %s19, 2
    %p189 = por %p187, %p188
    %p191 = scmp.ne.s32.totalorder %s176, %s190
    %p192 = scmp.eq.s32.totalorder %s19, 0
    %p193 = por %p191, %p192
    %p194 = scmp.le.s32.totalorder 1, %s13
    %p195 = scmp.lt.s32.totalorder %s13, 4
    %p196 = pnand %p194, %p195
    %p197 = pneg %p196
    // Predicated region
    $region9: #{tpu_custom_call.1} parent=5 // pred_check
      _
    $region10: #{tpu_custom_call.1} parent=5 // pred_check_branch
      %199 = sbr.rel (%p196) target = $region12
    $region11: #{tpu_custom_call.1} parent=5 // pred_region
      %s200 = ssub.s32 %s13, 1
      // Predicated region
      $region13: #{tpu_custom_call.1} parent=11 // pred_check
        %p201 = pneg %p60
      $region14: #{tpu_custom_call.1} parent=11 // pred_check_branch
        %203 = sbr.rel (%p201) target = $region16
      $region15: #{tpu_custom_call.1} parent=11 // pred_region
        _
      $region16: #{tpu_custom_call.1} parent=11 // pred_fallthru
        _
      // Predicated region
      $region17: #{tpu_custom_call.1} parent=11 // pred_check
        %p204 = pneg %p81
      $region18: #{tpu_custom_call.1} parent=11 // pred_check_branch
        %206 = sbr.rel (%p204) target = $region20
      $region19: #{tpu_custom_call.1} parent=11 // pred_region
        _
      $region20: #{tpu_custom_call.1} parent=11 // pred_fallthru
        _
      // Predicated region
      $region21: #{tpu_custom_call.1} parent=11 // pred_check
        %p207 = pneg %p102
      $region22: #{tpu_custom_call.1} parent=11 // pred_check_branch
        %209 = sbr.rel (%p207) target = $region24
      $region23: #{tpu_custom_call.1} parent=11 // pred_region
        _
      $region24: #{tpu_custom_call.1} parent=11 // pred_fallthru
        _
      // Predicated region
      $region25: #{tpu_custom_call.1} parent=11 // pred_check
        %p210 = pneg %p123
      $region26: #{tpu_custom_call.1} parent=11 // pred_check_branch
        %212 = sbr.rel (%p210) target = $region28
      $region27: #{tpu_custom_call.1} parent=11 // pred_region
        _
      $region28: #{tpu_custom_call.1} parent=11 // pred_fallthru
        _
      // Predicated region
      $region29: #{tpu_custom_call.1} parent=11 // pred_check
        %p213 = pneg %p144
      $region30: #{tpu_custom_call.1} parent=11 // pred_check_branch
        %215 = sbr.rel (%p213) target = $region32
      $region31: #{tpu_custom_call.1} parent=11 // pred_region
        _
      $region32: #{tpu_custom_call.1} parent=11 // pred_fallthru
        _
      // Predicated region
      $region33: #{tpu_custom_call.1} parent=11 // pred_check
        %p216 = pneg %p165
      $region34: #{tpu_custom_call.1} parent=11 // pred_check_branch
        %218 = sbr.rel (%p216) target = $region36
      $region35: #{tpu_custom_call.1} parent=11 // pred_region
        _
      $region36: #{tpu_custom_call.1} parent=11 // pred_fallthru
        _
    $region12: #{tpu_custom_call.1} parent=5 // pred_fallthru
      _
    %p219 = scmp.lt.s32.totalorder %s13, 3
    // Predicated region
    $region37: #{tpu_custom_call.1} parent=5 // pred_check
      %p220 = pneg %p219
    $region38: #{tpu_custom_call.1} parent=5 // pred_check_branch
      %222 = sbr.rel (%p220) target = $region40
    $region39: #{tpu_custom_call.1} parent=5 // pred_region
      // Predicated region
      $region41: #{tpu_custom_call.1} parent=39 // pred_check
        %p223 = pneg %p33
      $region42: #{tpu_custom_call.1} parent=39 // pred_check_branch
        %225 = sbr.rel (%p223) target = $region44
      $region43: #{tpu_custom_call.1} parent=39 // pred_region
        %p226 = scmp.lt.s32.totalorder %s13, 2
        %s227 = scalar_select %p226, %s13, 2
        %s228 = smul.addr %s227, 8
        %s229 = scalar_lea.vmem %s0, %s228
      $region44: #{tpu_custom_call.1} parent=39 // pred_fallthru
        _
    $region40: #{tpu_custom_call.1} parent=5 // pred_fallthru
      _
    %p230 = scmp.le.s32.totalorder 1, %s13
    %p231 = scmp.lt.s32.totalorder %s13, 4
    %p232 = pnand %p230, %p231
    %p233 = pneg %p232
    // Predicated region
    $region45: #{tpu_custom_call.1} parent=5 // pred_check
      _
    $region46: #{tpu_custom_call.1} parent=5 // pred_check_branch
      %235 = sbr.rel (%p232) target = $region48
    $region47: #{tpu_custom_call.1} parent=5 // pred_region
      %s236 = ssub.s32 %s13, 1
      %p237 = scmp.lt.s32.totalorder %s18, 2
      %s238 = scalar_select %p237, %s18, 2
      %s239 = smul.addr %s238, 8
      %s240 = scalar_lea.vmem %s0, %s239
      %p241 = pneg %p39
      %p242 = pneg %p36
      %p243 = pneg %p60
      %p244 = pneg %p57
      %p245 = pneg %p81
      %p246 = pneg %p78
      %p247 = pneg %p102
      %p248 = pneg %p99
      %p249 = pneg %p123
      %p250 = pneg %p120
      %p251 = pneg %p144
      %p252 = pneg %p141
      %p253 = pneg %p165
      %p254 = pneg %p162
      %p255 = pneg %p186
      %p256 = pneg %p183
      %p257 = scmp.lt.s32.totalorder %s18, 2
      %s258 = scalar_select %p257, %s18, 2
      %s259 = smul.addr %s258, 8
      %s260 = scalar_lea.vmem %s0, %s259
      %p261 = scmp.eq.s32.totalorder %s18, 0
      // Predicated region
      $region49: #{tpu_custom_call.1} parent=47 // pred_check
        %p262 = pneg %p261
      $region50: #{tpu_custom_call.1} parent=47 // pred_check_branch
        %264 = sbr.rel (%p262) target = $region52
      $region51: #{tpu_custom_call.1} parent=47 // pred_region
        %vm265 = vcmask 0
        %266 = vst.msk [vmem:[#allocation2] sm:$0x1] %vm265, 0.0
      $region52: #{tpu_custom_call.1} parent=47 // pred_fallthru
        _
      %v267 = vld [vmem:[%s260] sm:$0xff]
      %v268 = vld [vmem:[%s1] sm:$0xff]
      %v269 = vld [vmem:[%s1 + $0x8] sm:$0xff]
      %v270 = vld [vmem:[%s2] sm:$0x1]
      %v272 = vlaneseq
      %v273 = vshrl.u32 %v272, 7
      %v274 = vsub.s32 0, %v273
      %v275 = vrot.slane %v270, %v274
      %vm277 = vcmask 130048
      %v279 = vsel %vm277, %v267, 0
      %281 = vmatprep.subr.mxu0 0.0
      %282 = vmatpush1.msra.mxu0 %v268
      %283 = vmatprep.subr.mxu0 0.0
      %284 = vmatpush1.msra.mxu0 %v269
      %285 = vmatprep.subr.mxu0 0.0
      %286 = vmatpush1.msra.mxu0 0.0
      %287 = vmatprep.subr.mxu0 0.0
      %288 = vmatpush1.msra.mxu0 0.0
      %289 = vmatprep.subr.mxu0 0.0
      %290 = vmatpush1.msra.mxu0 0.0
      %291 = vmatprep.subr.mxu0 0.0
      %292 = vmatpush1.msra.mxu0 0.0
      %293 = vmatprep.subr.mxu0 0.0
      %294 = vmatpush1.msra.mxu0 0.0
      %295 = vmatprep.subr.mxu0 0.0
      %296 = vmatpush1.msra.mxu0 0.0
      %297 = vmatprep.subr.mxu0 0.0
      %298 = vmatpush1.msra.mxu0 0.0
      %299 = vmatprep.subr.mxu0 0.0
      %300 = vmatpush1.msra.mxu0 0.0
      %301 = vmatprep.subr.mxu0 0.0
      %302 = vmatpush1.msra.mxu0 0.0
      %303 = vmatprep.subr.mxu0 0.0
      %304 = vmatpush1.msra.mxu0 0.0
      %305 = vmatprep.subr.mxu0 0.0
      %306 = vmatpush1.msra.mxu0 0.0
      %307 = vmatprep.subr.mxu0 0.0
      %308 = vmatpush1.msra.mxu0 0.0
      %309 = vmatprep.subr.mxu0 0.0
      %310 = vmatpush1.msra.mxu0 0.0
      %311 = vmatprep.subr.mxu0 0.0
      %312 = vmatpush1.msra.mxu0 0.0
      %313 = vmatprep.subr.mxu0 0.0
      %314 = vmatpush1.msra.mxu0 0.0
      %315 = vmatprep.subr.mxu0 0.0
      %316 = vmatpush1.msra.mxu0 0.0
      %317 = vmatprep.subr.mxu0 0.0
      %318 = vmatpush1.msra.mxu0 0.0
      %319 = vmatprep.subr.mxu0 0.0
      %320 = vmatpush1.msra.mxu0 0.0
      %321 = vmatprep.subr.mxu0 0.0
      %322 = vmatpush1.msra.mxu0 0.0
      %323 = vmatprep.subr.mxu0 0.0
      %324 = vmatpush1.msra.mxu0 0.0
      %325 = vmatprep.subr.mxu0 0.0
      %326 = vmatpush1.msra.mxu0 0.0
      %327 = vmatprep.subr.mxu0 0.0
      %328 = vmatpush1.msra.mxu0 0.0
      %329 = vmatprep.subr.mxu0 0.0
      %330 = vmatpush1.msra.mxu0 0.0
      %331 = vmatprep.subr.mxu0 0.0
      %332 = vmatpush1.msra.mxu0 0.0
      %333 = vmatprep.subr.mxu0 0.0
      %334 = vmatpush1.msra.mxu0 0.0
      %335 = vmatprep.subr.mxu0 0.0
      %336 = vmatpush1.msra.mxu0 0.0
      %337 = vmatprep.subr.mxu0 0.0
      %338 = vmatpush1.msra.mxu0 0.0
      %339 = vmatprep.subr.mxu0 0.0
      %340 = vmatpush1.msra.mxu0 0.0
      %341 = vmatprep.subr.mxu0 0.0
      %342 = vmatpush1.msra.mxu0 0.0
      %343 = vmatprep.subr.mxu0 0.0
      %344 = vmatpush1.msra.mxu0 0.0
      %345 = vmatprep.mubr.f32.mxu0 0.0
      %346 = vmatmul.mubr.f32.gmra.mrb[0].mxu0 %v279
      %v347 = vpop.f32.mrb[0].mxu0
      %v348 = vadd.f32 %v275, %v347
      %v349 = vpop.f32.mrb[0].mxu0
      %350 = vdwg.mxu0
      %v351 = vmax.f32 %v348, 0.0
      %v352 = vld [vmem:[%s3] sm:$0xff]
      %v353 = vld [vmem:[%s3 + $0x8] sm:$0xff]
      %v354 = vld [vmem:[%s3 + $0x10] sm:$0xff]
      %v355 = vld [vmem:[%s3 + $0x18] sm:$0xff]
      %v356 = vld [vmem:[%s3 + $0x20] sm:$0xff]
      %v357 = vld [vmem:[%s3 + $0x28] sm:$0xff]
      %v358 = vld [vmem:[%s3 + $0x30] sm:$0xff]
      %v359 = vld [vmem:[%s3 + $0x38] sm:$0xff]
      %v360 = vld [vmem:[%s4] sm:$0x1]
      %v362 = vlaneseq
      %v363 = vshrl.u32 %v362, 7
      %v364 = vsub.s32 0, %v363
      %v365 = vrot.slane %v360, %v364
      %vm367 = vcmask 523264
      %v369 = vsel %vm367, %v351, 0
      %371 = vmatprep.subr.mxu0 0.0
      %372 = vmatpush1.msra.mxu0 %v352
      %373 = vmatprep.subr.mxu0 0.0
      %374 = vmatpush1.msra.mxu0 %v353
      %375 = vmatprep.subr.mxu0 0.0
      %376 = vmatpush1.msra.mxu0 %v354
      %377 = vmatprep.subr.mxu0 0.0
      %378 = vmatpush1.msra.mxu0 %v355
      %379 = vmatprep.subr.mxu0 0.0
      %380 = vmatpush1.msra.mxu0 %v356
      %381 = vmatprep.subr.mxu0 0.0
      %382 = vmatpush1.msra.mxu0 %v357
      %383 = vmatprep.subr.mxu0 0.0
      %384 = vmatpush1.msra.mxu0 %v358
      %385 = vmatprep.subr.mxu0 0.0
      %386 = vmatpush1.msra.mxu0 %v359
      %387 = vmatprep.subr.mxu0 0.0
      %388 = vmatpush1.msra.mxu0 0.0
      %389 = vmatprep.subr.mxu0 0.0
      %390 = vmatpush1.msra.mxu0 0.0
      %391 = vmatprep.subr.mxu0 0.0
      %392 = vmatpush1.msra.mxu0 0.0
      %393 = vmatprep.subr.mxu0 0.0
      %394 = vmatpush1.msra.mxu0 0.0
      %395 = vmatprep.subr.mxu0 0.0
      %396 = vmatpush1.msra.mxu0 0.0
      %397 = vmatprep.subr.mxu0 0.0
      %398 = vmatpush1.msra.mxu0 0.0
      %399 = vmatprep.subr.mxu0 0.0
      %400 = vmatpush1.msra.mxu0 0.0
      %401 = vmatprep.subr.mxu0 0.0
      %402 = vmatpush1.msra.mxu0 0.0
      %403 = vmatprep.subr.mxu0 0.0
      %404 = vmatpush1.msra.mxu0 0.0
      %405 = vmatprep.subr.mxu0 0.0
      %406 = vmatpush1.msra.mxu0 0.0
      %407 = vmatprep.subr.mxu0 0.0
      %408 = vmatpush1.msra.mxu0 0.0
      %409 = vmatprep.subr.mxu0 0.0
      %410 = vmatpush1.msra.mxu0 0.0
      %411 = vmatprep.subr.mxu0 0.0
      %412 = vmatpush1.msra.mxu0 0.0
      %413 = vmatprep.subr.mxu0 0.0
      %414 = vmatpush1.msra.mxu0 0.0
      %415 = vmatprep.subr.mxu0 0.0
      %416 = vmatpush1.msra.mxu0 0.0
      %417 = vmatprep.subr.mxu0 0.0
      %418 = vmatpush1.msra.mxu0 0.0
      %419 = vmatprep.subr.mxu0 0.0
      %420 = vmatpush1.msra.mxu0 0.0
      %421 = vmatprep.subr.mxu0 0.0
      %422 = vmatpush1.msra.mxu0 0.0
      %423 = vmatprep.subr.mxu0 0.0
      %424 = vmatpush1.msra.mxu0 0.0
      %425 = vmatprep.subr.mxu0 0.0
      %426 = vmatpush1.msra.mxu0 0.0
      %427 = vmatprep.subr.mxu0 0.0
      %428 = vmatpush1.msra.mxu0 0.0
      %429 = vmatprep.subr.mxu0 0.0
      %430 = vmatpush1.msra.mxu0 0.0
      %431 = vmatprep.subr.mxu0 0.0
      %432 = vmatpush1.msra.mxu0 0.0
      %433 = vmatprep.subr.mxu0 0.0
      %434 = vmatpush1.msra.mxu0 0.0
      %435 = vmatprep.mubr.f32.mxu0 0.0
      %436 = vmatmul.mubr.f32.gmra.mrb[0].mxu0 %v369
      %v437 = vpop.f32.mrb[0].mxu0
      %v438 = vadd.f32 %v365, %v437
      %v439 = vpop.f32.mrb[0].mxu0
      %440 = vdwg.mxu0
      %v441 = vmax.f32 %v438, 0.0
      %v442 = vld [vmem:[%s5] sm:$0xff]
      %v443 = vld [vmem:[%s5 + $0x8] sm:$0xff]
      %v444 = vld [vmem:[%s5 + $0x10] sm:$0xff]
      %v445 = vld [vmem:[%s5 + $0x18] sm:$0xff]
      %v446 = vld [vmem:[%s5 + $0x20] sm:$0xff]
      %v447 = vld [vmem:[%s5 + $0x28] sm:$0xff]
      %v448 = vld [vmem:[%s5 + $0x30] sm:$0xff]
      %v449 = vld [vmem:[%s5 + $0x38] sm:$0xff]
      %v450 = vld [vmem:[%s6] sm:$0x1]
      %v452 = vlaneseq
      %v453 = vshrl.u32 %v452, 7
      %v454 = vsub.s32 0, %v453
      %v455 = vrot.slane %v450, %v454
      %v458 = vsel %vm367, %v441, 0
      %460 = vmatprep.subr.mxu0 0.0
      %461 = vmatpush1.msra.mxu0 %v442
      %462 = vmatprep.subr.mxu0 0.0
      %463 = vmatpush1.msra.mxu0 %v443
      %464 = vmatprep.subr.mxu0 0.0
      %465 = vmatpush1.msra.mxu0 %v444
      %466 = vmatprep.subr.mxu0 0.0
      %467 = vmatpush1.msra.mxu0 %v445
      %468 = vmatprep.subr.mxu0 0.0
      %469 = vmatpush1.msra.mxu0 %v446
      %470 = vmatprep.subr.mxu0 0.0
      %471 = vmatpush1.msra.mxu0 %v447
      %472 = vmatprep.subr.mxu0 0.0
      %473 = vmatpush1.msra.mxu0 %v448
      %474 = vmatprep.subr.mxu0 0.0
      %475 = vmatpush1.msra.mxu0 %v449
      %476 = vmatprep.subr.mxu0 0.0
      %477 = vmatpush1.msra.mxu0 0.0
      %478 = vmatprep.subr.mxu0 0.0
      %479 = vmatpush1.msra.mxu0 0.0
      %480 = vmatprep.subr.mxu0 0.0
      %481 = vmatpush1.msra.mxu0 0.0
      %482 = vmatprep.subr.mxu0 0.0
      %483 = vmatpush1.msra.mxu0 0.0
      %484 = vmatprep.subr.mxu0 0.0
      %485 = vmatpush1.msra.mxu0 0.0
      %486 = vmatprep.subr.mxu0 0.0
      %487 = vmatpush1.msra.mxu0 0.0
      %488 = vmatprep.subr.mxu0 0.0
      %489 = vmatpush1.msra.mxu0 0.0
      %490 = vmatprep.subr.mxu0 0.0
      %491 = vmatpush1.msra.mxu0 0.0
      %492 = vmatprep.subr.mxu0 0.0
      %493 = vmatpush1.msra.mxu0 0.0
      %494 = vmatprep.subr.mxu0 0.0
      %495 = vmatpush1.msra.mxu0 0.0
      %496 = vmatprep.subr.mxu0 0.0
      %497 = vmatpush1.msra.mxu0 0.0
      %498 = vmatprep.subr.mxu0 0.0
      %499 = vmatpush1.msra.mxu0 0.0
      %500 = vmatprep.subr.mxu0 0.0
      %501 = vmatpush1.msra.mxu0 0.0
      %502 = vmatprep.subr.mxu0 0.0
      %503 = vmatpush1.msra.mxu0 0.0
      %504 = vmatprep.subr.mxu0 0.0
      %505 = vmatpush1.msra.mxu0 0.0
      %506 = vmatprep.subr.mxu0 0.0
      %507 = vmatpush1.msra.mxu0 0.0
      %508 = vmatprep.subr.mxu0 0.0
      %509 = vmatpush1.msra.mxu0 0.0
      %510 = vmatprep.subr.mxu0 0.0
      %511 = vmatpush1.msra.mxu0 0.0
      %512 = vmatprep.subr.mxu0 0.0
      %513 = vmatpush1.msra.mxu0 0.0
      %514 = vmatprep.subr.mxu0 0.0
      %515 = vmatpush1.msra.mxu0 0.0
      %516 = vmatprep.subr.mxu0 0.0
      %517 = vmatpush1.msra.mxu0 0.0
      %518 = vmatprep.subr.mxu0 0.0
      %519 = vmatpush1.msra.mxu0 0.0
      %520 = vmatprep.subr.mxu0 0.0
      %521 = vmatpush1.msra.mxu0 0.0
      %522 = vmatprep.subr.mxu0 0.0
      %523 = vmatpush1.msra.mxu0 0.0
      %524 = vmatprep.mubr.f32.mxu0 0.0
      %525 = vmatmul.mubr.f32.gmra.mrb[0].mxu0 %v458
      %v526 = vpop.f32.mrb[0].mxu0
      %v527 = vadd.f32 %v455, %v526
      %v528 = vpop.f32.mrb[0].mxu0
      %529 = vdwg.mxu0
      %s530 = smul.u32 %s18, 8
      %532 = vset.pattern.permute.xlu0 4
      %533 = vperm.xlu0 %532, %v527
      %v534 = vpop.permute.xlu0 %533
      %v536 = vadd.f32 %v534, %v527
      %s537 = scalar_lea.vmem %s7, %s530
      %vm538 = vcmask 31744
      %539 = vst.msk [vmem:[%s537] sm:$0xff] %vm538, %v536
      %v540 = vlaneseq
      %v541 = vshrl.u32 %v540, 7
      %v542 = vstv %s530
      %v543 = vadd.s32 %v542, %v541
      %vm544 = vcmp.lt.s32.totalorder %v543, 20
      %v545 = vsel %vm544, %v527, 0.0
      %v546 = vld [vmem:[#allocation2] sm:$0x1]
      %v547 = vsel %vm538, %v545, 0.0
      %548 = vadd.xlane.f32.xlu0 %v547
      %v549 = vpop.xlane.xlu0 %548
      %v550 = vrot.slane %v549, 4
      %v551 = vadd.f32 %v549, %v550
      %v552 = vrot.slane %v551, 2
      %v553 = vadd.f32 %v551, %v552
      %v554 = vrot.slane %v553, 1
      %v555 = vadd.f32 %v553, %v554
      %s556 = vtos %v555
      %v557 = vstv %s556
      %v558 = vadd.f32 %v546, %v557
      %vm559 = vcmask 0
      %560 = vst.msk [vmem:[#allocation2] sm:$0x1] %vm559, %v558
      %p561 = scmp.eq.s32.totalorder %s18, 2
      // Predicated region
      $region53: #{tpu_custom_call.1} parent=47 // pred_check
        %p562 = pneg %p561
      $region54: #{tpu_custom_call.1} parent=47 // pred_check_branch
        %564 = sbr.rel (%p562) target = $region56
      $region55: #{tpu_custom_call.1} parent=47 // pred_region
        %v565 = vld [vmem:[#allocation2] sm:$0x1]
        %v566 = vmul.f32 %v565, 0.0125
        %v567 = vld [vmem:[%s7] sm:$0xff]
        %v568 = vld [vmem:[%s7 + $0x8] sm:$0xff]
        %v569 = vld [vmem:[%s7 + $0x10] sm:$0xff]
        %v571 = vlaneseq
        %v572 = vshrl.u32 %v571, 7
        %v573 = vsub.s32 0, %v572
        %v574 = vrot.slane %v566, %v573
        %575 = vset.pattern.permute.xlu0 0
        %576 = vperm.xlu0 %575, %v574
        %v577 = vpop.permute.xlu0 %576
        %v579 = vsub.f32 %v567, %v577
        %v580 = vsub.f32 %v568, %v577
        %v581 = vsub.f32 %v569, %v577
        %582 = vst.msk [vmem:[%s7] sm:$0xff] %vm538, %v579
        %583 = vst.msk [vmem:[%s7 + $0x8] sm:$0xff] %vm538, %v580
        %584 = vst.msk [vmem:[%s7 + $0x10] sm:$0xff] %vm538, %v581
      $region56: #{tpu_custom_call.1} parent=47 // pred_fallthru
        _
      // Predicated region
      $region57: #{tpu_custom_call.1} parent=47 // pred_check
        %p585 = pneg %p183
      $region58: #{tpu_custom_call.1} parent=47 // pred_check_branch
        %587 = sbr.rel (%p585) target = $region60
      $region59: #{tpu_custom_call.1} parent=47 // pred_region
        _
      $region60: #{tpu_custom_call.1} parent=47 // pred_fallthru
        _
      // Predicated region
      $region61: #{tpu_custom_call.1} parent=47 // pred_check
        %p588 = pneg %p183
      $region62: #{tpu_custom_call.1} parent=47 // pred_check_branch
        %590 = sbr.rel (%p588) target = $region64
      $region63: #{tpu_custom_call.1} parent=47 // pred_region
        _
      $region64: #{tpu_custom_call.1} parent=47 // pred_fallthru
        _
    $region48: #{tpu_custom_call.1} parent=5 // pred_fallthru
      _
    %p591 = scmp.le.s32.totalorder 2, %s13
    // Predicated region
    $region65: #{tpu_custom_call.1} parent=5 // pred_check
      %p592 = pneg %p591
    $region66: #{tpu_custom_call.1} parent=5 // pred_check_branch
      %594 = sbr.rel (%p592) target = $region68
    $region67: #{tpu_custom_call.1} parent=5 // pred_region
      %s595 = ssub.s32 %s13, 2
    $region68: #{tpu_custom_call.1} parent=5 // pred_fallthru
      _
  $region6: #{tpu_custom_call.1} parent=0 // loop_footer
    %s17 = sadd.s32 1, %s13
  $region7: #{tpu_custom_call.1} parent=0 // loop_footer_branch
    %12 = sbr.rel target = $region3
  $region8: #{tpu_custom_call.1} parent=0 // loop_exit
    _

</llo_original>
